<compile_context>
chip_gen: v6e
topology: v6e:2x2x1
jax: 0.10.0
libtpu: 0.0.40
codegen_flags: <defaults>
</compile_context>

<pallas_src>
import math

import jax
import jax.numpy as jnp
from jax import lax
from jax.experimental import pallas as pl
from jax.experimental.pallas import tpu as pltpu


def _round_up(x, m):
    return (x + m - 1) // m * m


def pos_emb_kernel(idx_ref, table_ref, out_ref):
    # idx_ref:   [4, tile_n] int32 rows (x1, y1, w, h) — NOT offset.
    # table_ref: [E, 4V]     f32, transposed concatenated (x;y;w;h) tables.
    # out_ref:   [tile_n, E] f32 (natural layout; no wrapper transpose).
    idx = idx_ref[...]
    four_v = table_ref.shape[1]
    V = four_v // 4
    tile_n = idx.shape[1]

    # ONE small [V, tile_n] iota; each index row selects inside its own
    # disjoint sublane slab of the [4V, tile_n] operand, so the old
    # "OR of four wide one-hots" becomes a plain concat (no ORs, no offsets).
    iota = lax.broadcasted_iota(jnp.int32, (V, tile_n), 0)
    multihot = jnp.concatenate(
        [
            (iota == idx[0:1, :]).astype(jnp.float32),   # x slab
            (iota == idx[1:2, :]).astype(jnp.float32),   # y slab
            (iota == idx[2:3, :]).astype(jnp.float32),   # w slab
            (iota == idx[3:4, :]).astype(jnp.float32),   # h slab
        ],
        axis=0,
    )                                                    # [4V, tile_n]

    # Single fused gather+sum on the MXU: [E, 4V] @ [4V, tile_n] -> [E, tile_n].
    acc = jnp.dot(table_ref[...], multihot, preferred_element_type=jnp.float32)

    # Transpose the small [E, tile_n] result on the idle XLU and store the
    # block in natural [tile_n, E] layout — saves the external HBM transpose.
    out_ref[...] = acc.T.astype(out_ref.dtype)


def prepare_position_tables(x_table, y_table, h_table, w_table):
    """One-time table prep (hoist out of the per-forward path).

    Concatenates the four [V, E] tables along the vocab axis in (x, y, w, h)
    order — matching the kernel's index-row / slab order — and transposes to
    a lane-dense [E, 4V] f32 operand that stays resident across the grid.
    """
    return jnp.concatenate(
        [x_table, y_table, w_table, h_table], axis=0).astype(jnp.float32).T


def my_position_embedding(bboxes, cat_table_t, *, tile_n=1024):
    """bboxes: integer [..., 4] (x1, y1, x2, y2); cat_table_t: [E, 4V] from
    prepare_position_tables.

    Returns [..., E] float32 equal to
        x_emb[x1] + y_emb[y1] + w_emb[x2 - x1] + h_emb[y2 - y1].
    """
    lead_shape = bboxes.shape[:-1]
    N = math.prod(lead_shape) if lead_shape else 1
    E, four_v = cat_table_t.shape
    V = four_v // 4

    bb = bboxes.reshape(N, 4).astype(jnp.int32)
    x1 = bb[:, 0]
    y1 = bb[:, 1]
    w = bb[:, 2] - x1
    h = bb[:, 3] - y1

    # Lane-dense [4, N] index rows (x1, y1, w, h) — no table offsets needed.
    idx = jnp.stack(
        [
            jnp.clip(x1, 0, V - 1),
            jnp.clip(y1, 0, V - 1),
            jnp.clip(w, 0, V - 1),
            jnp.clip(h, 0, V - 1),
        ],
        axis=0,
    )

    # Tile sizing: cap at the 128-rounded problem size so small inputs don't
    # pay for a full padded tile; if everything fits in one tile but there is
    # enough work for two, split so the "parallel" grid axis can shard across
    # both v7x TensorCores.
    n128 = _round_up(max(N, 1), 128)
    tile_n = max(128, min(tile_n, n128))
    if n128 >= 256 and tile_n >= n128:
        tile_n = _round_up(pl.cdiv(n128, 2), 128)
    n_tiles = pl.cdiv(n128, tile_n)
    n_pad = n_tiles * tile_n

    if n_pad != N:
        idx = jnp.pad(idx, ((0, 0), (0, n_pad - N)))   # pad index 0 is valid

    out = pl.pallas_call(
        pos_emb_kernel,
        out_shape=jax.ShapeDtypeStruct((n_pad, E), jnp.float32),
        grid_spec=pltpu.PrefetchScalarGridSpec(
            num_scalar_prefetch=0,
            grid=(n_tiles,),
            in_specs=[
                pl.BlockSpec((4, tile_n), lambda i: (0, i)),     # index tile
                pl.BlockSpec((E, four_v), lambda i: (0, 0)),     # resident table
            ],
            out_specs=pl.BlockSpec((tile_n, E), lambda i: (i, 0)),
        ),
        compiler_params=pltpu.CompilerParams(
            dimension_semantics=("parallel",)),
    )(idx, cat_table_t)

    out = out[:N]                       # drop pad rows (natural [N, E] layout)
    return out.reshape(*lead_shape, E)


if __name__ == "__main__":
    # Small config: max_2d_position_embeddings=64, embed_size=32, batch=2, seq=8
    V, E = 64, 32
    B, S = 2, 8

    key = jax.random.PRNGKey(0)
    k_xt, k_yt, k_ht, k_wt, k_p1, k_p2 = jax.random.split(key, 6)

    # "nn.Embedding" weights (normal(0, 1), like PyTorch default).
    x_table = jax.random.normal(k_xt, (V, E), dtype=jnp.float32)
    y_table = jax.random.normal(k_yt, (V, E), dtype=jnp.float32)
    h_table = jax.random.normal(k_ht, (V, E), dtype=jnp.float32)
    w_table = jax.random.normal(k_wt, (V, E), dtype=jnp.float32)

    # Valid bboxes: x1,y1 in [0, V/2), x2 = x1 + dw, y2 = y1 + dh, all < V.
    p1 = jax.random.randint(k_p1, (B, S, 2), 0, V // 2, dtype=jnp.int32)
    d = jax.random.randint(k_p2, (B, S, 2), 0, V // 2, dtype=jnp.int32)
    p2 = p1 + d
    bboxes = jnp.concatenate([p1, p2], axis=-1)   # [B, S, 4] = (x1, y1, x2, y2)

    # One-time table prep (hoisted out of the per-call path).
    cat_table_t = prepare_position_tables(x_table, y_table, h_table, w_table)

    out = my_position_embedding(bboxes, cat_table_t)
    out = jax.block_until_ready(out)

    # Pure-JAX reference of the torch forward.
    x1, y1, x2, y2 = jnp.split(bboxes, 4, axis=-1)
    ref = (jnp.take(x_table, x1, axis=0)
           + jnp.take(y_table, y1, axis=0)
           + jnp.take(w_table, x2 - x1, axis=0)
           + jnp.take(h_table, y2 - y1, axis=0))
    ref = jnp.squeeze(ref, axis=-2)               # squeeze(-2) -> [B, S, E]

    assert out.shape == (B, S, E)
    assert jnp.allclose(out, ref, atol=1e-5, rtol=1e-5)
    print("KERNEL_OK")
</pallas_src>

<mosaic_0001>
module attributes {stable_mosaic.version = 11 : i64} {
  func.func @pos_emb_kernel(%arg0: i32, %arg1: memref<4x128xi32, #tpu.memory_space<vmem>>, %arg2: memref<32x256xf32, #tpu.memory_space<vmem>>, %arg3: memref<128x32xf32, #tpu.memory_space<vmem>>) attributes {dimension_semantics = [#tpu.dimension_semantics<parallel>], iteration_bounds = array<i64: 1>, scalar_prefetch = 0 : i64, scratch_operands = 0 : i64, tpu.core_type = #tpu.core_type<tc>, window_params = [{transform_indices = @transform_0, window_bounds = array<i64: 4, 128>}, {pipeline_mode = #tpu.pipeline_mode<synchronous>, transform_indices = @transform_1, window_bounds = array<i64: 32, 256>}, {transform_indices = @transform_2, window_bounds = array<i64: 128, 32>}]} {
    %c0 = arith.constant 0 : index
    %c0_0 = arith.constant 0 : index
    %0 = vector.load %arg1[%c0, %c0_0] : memref<4x128xi32, #tpu.memory_space<vmem>>, vector<4x128xi32>
    %1 = tpu.iota {dimensions = array<i32: 0>} : vector<64x128xi32>
    %2 = vector.extract_strided_slice %0 {offsets = [0, 0], sizes = [1, 128], strides = [1, 1]} : vector<4x128xi32> to vector<1x128xi32>
    %3 = vector.broadcast %2 : vector<1x128xi32> to vector<64x128xi32>
    %4 = arith.cmpi eq, %1, %3 : vector<64x128xi32>
    %5 = arith.extui %4 : vector<64x128xi1> to vector<64x128xi32>
    %6 = arith.sitofp %5 : vector<64x128xi32> to vector<64x128xf32>
    %7 = vector.extract_strided_slice %0 {offsets = [1, 0], sizes = [1, 128], strides = [1, 1]} : vector<4x128xi32> to vector<1x128xi32>
    %8 = vector.broadcast %7 : vector<1x128xi32> to vector<64x128xi32>
    %9 = arith.cmpi eq, %1, %8 : vector<64x128xi32>
    %10 = arith.extui %9 : vector<64x128xi1> to vector<64x128xi32>
    %11 = arith.sitofp %10 : vector<64x128xi32> to vector<64x128xf32>
    %12 = vector.extract_strided_slice %0 {offsets = [2, 0], sizes = [1, 128], strides = [1, 1]} : vector<4x128xi32> to vector<1x128xi32>
    %13 = vector.broadcast %12 : vector<1x128xi32> to vector<64x128xi32>
    %14 = arith.cmpi eq, %1, %13 : vector<64x128xi32>
    %15 = arith.extui %14 : vector<64x128xi1> to vector<64x128xi32>
    %16 = arith.sitofp %15 : vector<64x128xi32> to vector<64x128xf32>
    %17 = vector.extract_strided_slice %0 {offsets = [3, 0], sizes = [1, 128], strides = [1, 1]} : vector<4x128xi32> to vector<1x128xi32>
    %18 = vector.broadcast %17 : vector<1x128xi32> to vector<64x128xi32>
    %19 = arith.cmpi eq, %1, %18 : vector<64x128xi32>
    %20 = arith.extui %19 : vector<64x128xi1> to vector<64x128xi32>
    %21 = arith.sitofp %20 : vector<64x128xi32> to vector<64x128xf32>
    %22 = tpu.concatenate %6, %11, %16, %21 in 0 : vector<64x128xf32>, vector<64x128xf32>, vector<64x128xf32>, vector<64x128xf32> -> vector<256x128xf32>
    %c0_1 = arith.constant 0 : index
    %c0_2 = arith.constant 0 : index
    %23 = vector.load %arg2[%c0_1, %c0_2] : memref<32x256xf32, #tpu.memory_space<vmem>>, vector<32x256xf32>
    %cst = arith.constant dense<0.000000e+00> : vector<32x128xf32>
    %24 = tpu.matmul %23, %22, %cst {dimension_numbers = #tpu.dot_dimension_numbers<[1], [0], [0], [1], [0, 0, 1, 1], [], []>} : vector<32x256xf32>, vector<256x128xf32>, vector<32x128xf32> -> vector<32x128xf32>
    %25 = tpu.transpose %24, [1, 0] : vector<32x128xf32> -> vector<128x32xf32>
    %c0_3 = arith.constant 0 : index
    %c0_4 = arith.constant 0 : index
    %26 = vector.load %arg3[%c0_3, %c0_4] : memref<128x32xf32, #tpu.memory_space<vmem>>, vector<128x32xf32>
    tpu.vector_store %arg3[%c0_3, %c0_4], %25 {strides = array<i32>} : memref<128x32xf32, #tpu.memory_space<vmem>>, vector<128x32xf32>,
    return
  }
  func.func @transform_0(%arg0: i32) -> (i32, i32) {
    %c0_i32 = arith.constant 0 : i32
    %c0_i32_0 = arith.constant 0 : i32
    return %c0_i32, %arg0 : i32, i32
  }
  func.func @transform_1(%arg0: i32) -> (i32, i32) {
    %c0_i32 = arith.constant 0 : i32
    %c0_i32_0 = arith.constant 0 : i32
    %c0_i32_1 = arith.constant 0 : i32
    return %c0_i32, %c0_i32_0 : i32, i32
  }
  func.func @transform_2(%arg0: i32) -> (i32, i32) {
    %c0_i32 = arith.constant 0 : i32
    %c0_i32_0 = arith.constant 0 : i32
    return %arg0, %c0_i32 : i32, i32
  }
}

</mosaic_0001>

<llo_original>
// kernel: tpu_custom_call.1
$region0: #{tpu_custom_call.1}
  #allocation0 [shape = 'u32[]', space=smem, size = 0x4, offset = 0x4, fixed_abs, tag = 'smem constant byte address 0x4 - core index']
  #allocation1 [shape = 'u32[144,128]{1,0:T(1,128)}', space=vmem, size = 0x12000, scoped, tag = 'internal scratch']
  %s0 = inlined_call_operand.hbm [shape: s32[4,128], index: 0, kind: input, shape index: {}]
  %s1 = inlined_call_operand.hbm [shape: f32[32,256], index: 1, kind: input, shape index: {}]
  %s2 = inlined_call_operand.vmem [shape: f32[128,32], index: 2, kind: output, shape index: {}]
  %s3 = sld [smem:[#allocation0]]
  $region26: #{tpu_custom_call.1} parent=0
    _
  %s5 = ssub.s32 1, %s3
  %s6 = scalar_select 0, %s5, %s3
  $region1: #{tpu_custom_call.1} parent=0
    #allocation2 [shape = 'u8[2048]{0}', space=vmem, size = 0x800, scoped, tag = 'input window, operand 0, single buffered']
    #allocation3 [shape = 's32[1]{0}', space=sflag, size = 0x4, scoped, tag = 'scoped memory for tpu_custom_call.1']
    #allocation4 [shape = 'u8[32768]{0}', space=vmem, size = 0x8000, scoped, tag = 'input window, operand 1, single buffered']
    #allocation5 [shape = 's32[1]{0}', space=sflag, size = 0x4, scoped, tag = 'scoped memory for tpu_custom_call.1']
    %7 = vsyncpa [#allocation3], 0
    %8 = vsyncpa [#allocation5], 0
    // Predicated region
    $region2: #{tpu_custom_call.1} parent=1 // pred_check
      _
    $region3: #{tpu_custom_call.1} parent=1 // pred_check_branch
      %10 = sbr.rel (0) target = $region5
    $region4: #{tpu_custom_call.1} parent=1 // pred_region
      %s12 = ssub.s32 64, 64
      %13 = vsyncadd [#allocation3], %s12
      %s15 = sshll.u32 [#allocation2], 4
      %s16 = int_to_ptr.vmem [resolvable:$true] %s15
      %18 = dma.hbm_to_vmem [thread:$0]  %s0, 64, %s16, [#allocation3]
    $region5: #{tpu_custom_call.1} parent=1 // pred_fallthru
      _
    // Predicated region
    $region6: #{tpu_custom_call.1} parent=1 // pred_check
      _
    $region7: #{tpu_custom_call.1} parent=1 // pred_check_branch
      %20 = sbr.rel (0) target = $region9
    $region8: #{tpu_custom_call.1} parent=1 // pred_region
      %s22 = ssub.s32 1024, 1024
      %23 = vsyncadd [#allocation5], %s22
      %s24 = sshll.u32 [#allocation4], 4
      %s25 = int_to_ptr.vmem [resolvable:$true] %s24
      %30 = dma.hbm_to_vmem [thread:$0]  %s1, 1024, %s25, [#allocation5], 256, 256, 16
    $region9: #{tpu_custom_call.1} parent=1 // pred_fallthru
      _
    // Predicated region
    $region10: #{tpu_custom_call.1} parent=1 // pred_check
      _
    $region11: #{tpu_custom_call.1} parent=1 // pred_check_branch
      %32 = sbr.rel (0) target = $region13
    $region12: #{tpu_custom_call.1} parent=1 // pred_region
      %33 = dma.done [#allocation3], 64
    $region13: #{tpu_custom_call.1} parent=1 // pred_fallthru
      _
    // Predicated region
    $region14: #{tpu_custom_call.1} parent=1 // pred_check
      _
    $region15: #{tpu_custom_call.1} parent=1 // pred_check_branch
      %35 = sbr.rel (0) target = $region17
    $region16: #{tpu_custom_call.1} parent=1 // pred_region
      %36 = dma.done [#allocation5], 1024
    $region17: #{tpu_custom_call.1} parent=1 // pred_fallthru
      _
    %v37 = vld [vmem:[#allocation2] sm:$0xf]
    %v38 = vlaneseq
    %v39 = vshrl.u32 %v38, 7
    %v40 = vadd.s32 %v39, 8
    %v41 = vadd.s32 %v39, 16
    %v42 = vadd.s32 %v39, 24
    %v43 = vadd.s32 %v39, 32
    %v44 = vadd.s32 %v39, 40
    %v45 = vadd.s32 %v39, 48
    %v46 = vadd.s32 %v39, 56
    %v47 = vlaneseq
    %v48 = vshrl.u32 %v47, 7
    %v49 = vsub.s32 0, %v48
    %v50 = vrot.slane %v37, %v49
    %vm51 = vcmp.eq.s32.totalorder %v39, %v50
    %vm52 = vcmp.eq.s32.totalorder %v40, %v50
    %vm53 = vcmp.eq.s32.totalorder %v41, %v50
    %vm54 = vcmp.eq.s32.totalorder %v42, %v50
    %vm55 = vcmp.eq.s32.totalorder %v43, %v50
    %vm56 = vcmp.eq.s32.totalorder %v44, %v50
    %vm57 = vcmp.eq.s32.totalorder %v45, %v50
    %vm58 = vcmp.eq.s32.totalorder %v46, %v50
    %v59 = vsel %vm51, 1, 0
    %v60 = vsel %vm52, 1, 0
    %v61 = vsel %vm53, 1, 0
    %v62 = vsel %vm54, 1, 0
    %v63 = vsel %vm55, 1, 0
    %v64 = vsel %vm56, 1, 0
    %v65 = vsel %vm57, 1, 0
    %v66 = vsel %vm58, 1, 0
    %v67 = vcvt.s32.f32 %v59
    %v68 = vcvt.s32.f32 %v60
    %v69 = vcvt.s32.f32 %v61
    %v70 = vcvt.s32.f32 %v62
    %v71 = vcvt.s32.f32 %v63
    %v72 = vcvt.s32.f32 %v64
    %v73 = vcvt.s32.f32 %v65
    %v74 = vcvt.s32.f32 %v66
    %v75 = vlaneseq
    %v76 = vshrl.u32 %v75, 7
    %v77 = vsub.s32 1, %v76
    %v78 = vrot.slane %v37, %v77
    %vm79 = vcmp.eq.s32.totalorder %v39, %v78
    %vm80 = vcmp.eq.s32.totalorder %v40, %v78
    %vm81 = vcmp.eq.s32.totalorder %v41, %v78
    %vm82 = vcmp.eq.s32.totalorder %v42, %v78
    %vm83 = vcmp.eq.s32.totalorder %v43, %v78
    %vm84 = vcmp.eq.s32.totalorder %v44, %v78
    %vm85 = vcmp.eq.s32.totalorder %v45, %v78
    %vm86 = vcmp.eq.s32.totalorder %v46, %v78
    %v87 = vsel %vm79, 1, 0
    %v88 = vsel %vm80, 1, 0
    %v89 = vsel %vm81, 1, 0
    %v90 = vsel %vm82, 1, 0
    %v91 = vsel %vm83, 1, 0
    %v92 = vsel %vm84, 1, 0
    %v93 = vsel %vm85, 1, 0
    %v94 = vsel %vm86, 1, 0
    %v95 = vcvt.s32.f32 %v87
    %v96 = vcvt.s32.f32 %v88
    %v97 = vcvt.s32.f32 %v89
    %v98 = vcvt.s32.f32 %v90
    %v99 = vcvt.s32.f32 %v91
    %v100 = vcvt.s32.f32 %v92
    %v101 = vcvt.s32.f32 %v93
    %v102 = vcvt.s32.f32 %v94
    %v103 = vlaneseq
    %v104 = vshrl.u32 %v103, 7
    %v105 = vsub.s32 2, %v104
    %v106 = vrot.slane %v37, %v105
    %vm107 = vcmp.eq.s32.totalorder %v39, %v106
    %vm108 = vcmp.eq.s32.totalorder %v40, %v106
    %vm109 = vcmp.eq.s32.totalorder %v41, %v106
    %vm110 = vcmp.eq.s32.totalorder %v42, %v106
    %vm111 = vcmp.eq.s32.totalorder %v43, %v106
    %vm112 = vcmp.eq.s32.totalorder %v44, %v106
    %vm113 = vcmp.eq.s32.totalorder %v45, %v106
    %vm114 = vcmp.eq.s32.totalorder %v46, %v106
    %v115 = vsel %vm107, 1, 0
    %v116 = vsel %vm108, 1, 0
    %v117 = vsel %vm109, 1, 0
    %v118 = vsel %vm110, 1, 0
    %v119 = vsel %vm111, 1, 0
    %v120 = vsel %vm112, 1, 0
    %v121 = vsel %vm113, 1, 0
    %v122 = vsel %vm114, 1, 0
    %v123 = vcvt.s32.f32 %v115
    %v124 = vcvt.s32.f32 %v116
    %v125 = vcvt.s32.f32 %v117
    %v126 = vcvt.s32.f32 %v118
    %v127 = vcvt.s32.f32 %v119
    %v128 = vcvt.s32.f32 %v120
    %v129 = vcvt.s32.f32 %v121
    %v130 = vcvt.s32.f32 %v122
    %v131 = vlaneseq
    %v132 = vshrl.u32 %v131, 7
    %v133 = vsub.s32 3, %v132
    %v134 = vrot.slane %v37, %v133
    %vm135 = vcmp.eq.s32.totalorder %v39, %v134
    %vm136 = vcmp.eq.s32.totalorder %v40, %v134
    %vm137 = vcmp.eq.s32.totalorder %v41, %v134
    %vm138 = vcmp.eq.s32.totalorder %v42, %v134
    %vm139 = vcmp.eq.s32.totalorder %v43, %v134
    %vm140 = vcmp.eq.s32.totalorder %v44, %v134
    %vm141 = vcmp.eq.s32.totalorder %v45, %v134
    %vm142 = vcmp.eq.s32.totalorder %v46, %v134
    %v143 = vsel %vm135, 1, 0
    %v144 = vsel %vm136, 1, 0
    %v145 = vsel %vm137, 1, 0
    %v146 = vsel %vm138, 1, 0
    %v147 = vsel %vm139, 1, 0
    %v148 = vsel %vm140, 1, 0
    %v149 = vsel %vm141, 1, 0
    %v150 = vsel %vm142, 1, 0
    %v151 = vcvt.s32.f32 %v143
    %v152 = vcvt.s32.f32 %v144
    %v153 = vcvt.s32.f32 %v145
    %v154 = vcvt.s32.f32 %v146
    %v155 = vcvt.s32.f32 %v147
    %v156 = vcvt.s32.f32 %v148
    %v157 = vcvt.s32.f32 %v149
    %v158 = vcvt.s32.f32 %v150
    %v159 = vld [vmem:[#allocation4] sm:$0xff]
    %v160 = vld [vmem:[#allocation4 + $0x8] sm:$0xff]
    %v161 = vld [vmem:[#allocation4 + $0x10] sm:$0xff]
    %v162 = vld [vmem:[#allocation4 + $0x18] sm:$0xff]
    %v163 = vld [vmem:[#allocation4 + $0x20] sm:$0xff]
    %v164 = vld [vmem:[#allocation4 + $0x28] sm:$0xff]
    %v165 = vld [vmem:[#allocation4 + $0x30] sm:$0xff]
    %v166 = vld [vmem:[#allocation4 + $0x38] sm:$0xff]
    %167 = vmatprep.subr.mxu0 0.0
    %168 = vmatpush1.msra.mxu0 %v102
    %169 = vmatprep.subr.mxu0 0.0
    %170 = vmatpush1.msra.mxu0 %v101
    %171 = vmatprep.subr.mxu0 0.0
    %172 = vmatpush1.msra.mxu0 %v100
    %173 = vmatprep.subr.mxu0 0.0
    %174 = vmatpush1.msra.mxu0 %v99
    %175 = vmatprep.subr.mxu0 0.0
    %176 = vmatpush1.msra.mxu0 %v98
    %177 = vmatprep.subr.mxu0 0.0
    %178 = vmatpush1.msra.mxu0 %v97
    %179 = vmatprep.subr.mxu0 0.0
    %180 = vmatpush1.msra.mxu0 %v96
    %181 = vmatprep.subr.mxu0 0.0
    %182 = vmatpush1.msra.mxu0 %v95
    %183 = vmatprep.subr.mxu0 0.0
    %184 = vmatpush1.msra.mxu0 %v74
    %185 = vmatprep.subr.mxu0 0.0
    %186 = vmatpush1.msra.mxu0 %v73
    %187 = vmatprep.subr.mxu0 0.0
    %188 = vmatpush1.msra.mxu0 %v72
    %189 = vmatprep.subr.mxu0 0.0
    %190 = vmatpush1.msra.mxu0 %v71
    %191 = vmatprep.subr.mxu0 0.0
    %192 = vmatpush1.msra.mxu0 %v70
    %193 = vmatprep.subr.mxu0 0.0
    %194 = vmatpush1.msra.mxu0 %v69
    %195 = vmatprep.subr.mxu0 0.0
    %196 = vmatpush1.msra.mxu0 %v68
    %197 = vmatprep.subr.mxu0 0.0
    %198 = vmatpush1.msra.mxu0 %v67
    %199 = vmatprep.subr.mxu0 0.0
    %200 = vmatpush2.msra.mxu0 %v158
    %201 = vmatprep.subr.mxu0 0.0
    %202 = vmatpush2.msra.mxu0 %v157
    %203 = vmatprep.subr.mxu0 0.0
    %204 = vmatpush2.msra.mxu0 %v156
    %205 = vmatprep.subr.mxu0 0.0
    %206 = vmatpush2.msra.mxu0 %v155
    %207 = vmatprep.subr.mxu0 0.0
    %208 = vmatpush2.msra.mxu0 %v154
    %209 = vmatprep.subr.mxu0 0.0
    %210 = vmatpush2.msra.mxu0 %v153
    %211 = vmatprep.subr.mxu0 0.0
    %212 = vmatpush2.msra.mxu0 %v152
    %213 = vmatprep.subr.mxu0 0.0
    %214 = vmatpush2.msra.mxu0 %v151
    %215 = vmatprep.subr.mxu0 0.0
    %216 = vmatpush2.msra.mxu0 %v130
    %217 = vmatprep.subr.mxu0 0.0
    %218 = vmatpush2.msra.mxu0 %v129
    %219 = vmatprep.subr.mxu0 0.0
    %220 = vmatpush2.msra.mxu0 %v128
    %221 = vmatprep.subr.mxu0 0.0
    %222 = vmatpush2.msra.mxu0 %v127
    %223 = vmatprep.subr.mxu0 0.0
    %224 = vmatpush2.msra.mxu0 %v126
    %225 = vmatprep.subr.mxu0 0.0
    %226 = vmatpush2.msra.mxu0 %v125
    %227 = vmatprep.subr.mxu0 0.0
    %228 = vmatpush2.msra.mxu0 %v124
    %229 = vmatprep.subr.mxu0 0.0
    %230 = vmatpush2.msra.mxu0 %v123
    %231 = vmatprep.mubr.f32.mxu0 %v160
    %232 = vmatmul.mubr.f32.gmra.mxu0 %v159
    %v233 = vpop.f32.mrf.mxu0
    %v234 = vadd.f32 0.0, %v233
    %v235 = vpop.f32.mrf.mxu0
    %236 = vmatprep.mubr.f32.mxu0 %v162
    %237 = vmatmul.mubr.f32.gmra.mxu0 %v161
    %v238 = vpop.f32.mrf.mxu0
    %v239 = vadd.f32 0.0, %v238
    %v240 = vpop.f32.mrf.mxu0
    %241 = vmatprep.mubr.f32.mxu0 %v164
    %242 = vmatmul.mubr.f32.gmra.mxu0 %v163
    %v243 = vpop.f32.mrf.mxu0
    %v244 = vadd.f32 0.0, %v243
    %v245 = vpop.f32.mrf.mxu0
    %246 = vmatprep.mubr.f32.mxu0 %v166
    %247 = vmatmul.mubr.f32.gmra.mxu0 %v165
    %v248 = vpop.f32.mrf.mxu0
    %v249 = vadd.f32 0.0, %v248
    %v250 = vpop.f32.mrf.mxu0
    %251 = vdwg.mxu0
    %252 = vxpose.xlu0.b32.start [1/16] %v234, 128
    %253 = vxpose.xlu0.b32.cont [2/16] %v239, 128
    %254 = vxpose.xlu0.b32.cont [3/16] %v244, 128
    %255 = vxpose.xlu0.b32.cont [4/16] %v249, 128
    %256 = vxpose.xlu0.b32.cont [5/16] 0.0, 128
    %257 = vxpose.xlu0.b32.cont [6/16] 0.0, 128
    %258 = vxpose.xlu0.b32.cont [7/16] 0.0, 128
    %259 = vxpose.xlu0.b32.cont [8/16] 0.0, 128
    %260 = vxpose.xlu0.b32.cont [9/16] 0.0, 128
    %261 = vxpose.xlu0.b32.cont [10/16] 0.0, 128
    %262 = vxpose.xlu0.b32.cont [11/16] 0.0, 128
    %263 = vxpose.xlu0.b32.cont [12/16] 0.0, 128
    %264 = vxpose.xlu0.b32.cont [13/16] 0.0, 128
    %265 = vxpose.xlu0.b32.cont [14/16] 0.0, 128
    %266 = vxpose.xlu0.b32.cont [15/16] 0.0, 128
    %267 = vxpose.xlu0.b32.end [16/16] 0.0, 128
    %v268 = vpop.trf.xlu0
    %v269 = vpop.trf.xlu0
    %v270 = vpop.trf.xlu0
    %v271 = vpop.trf.xlu0
    %v272 = vpop.trf.xlu0
    %v273 = vpop.trf.xlu0
    %v274 = vpop.trf.xlu0
    %v275 = vpop.trf.xlu0
    %v276 = vpop.trf.xlu0
    %v277 = vpop.trf.xlu0
    %v278 = vpop.trf.xlu0
    %v279 = vpop.trf.xlu0
    %v280 = vpop.trf.xlu0
    %v281 = vpop.trf.xlu0
    %v282 = vpop.trf.xlu0
    %v283 = vpop.trf.xlu0
    %vm284 = vcmask 261120
    %285 = vst.msk [vmem:[%s2] sm:$0xff] %vm284, %v268
    %286 = vst.msk [vmem:[%s2 + $0x8] sm:$0xff] %vm284, %v269
    %287 = vst.msk [vmem:[%s2 + $0x10] sm:$0xff] %vm284, %v270
    %288 = vst.msk [vmem:[%s2 + $0x18] sm:$0xff] %vm284, %v271
    %289 = vst.msk [vmem:[%s2 + $0x20] sm:$0xff] %vm284, %v272
    %290 = vst.msk [vmem:[%s2 + $0x28] sm:$0xff] %vm284, %v273
    %291 = vst.msk [vmem:[%s2 + $0x30] sm:$0xff] %vm284, %v274
    %292 = vst.msk [vmem:[%s2 + $0x38] sm:$0xff] %vm284, %v275
    %293 = vst.msk [vmem:[%s2 + $0x40] sm:$0xff] %vm284, %v276
    %294 = vst.msk [vmem:[%s2 + $0x48] sm:$0xff] %vm284, %v277
    %295 = vst.msk [vmem:[%s2 + $0x50] sm:$0xff] %vm284, %v278
    %296 = vst.msk [vmem:[%s2 + $0x58] sm:$0xff] %vm284, %v279
    %297 = vst.msk [vmem:[%s2 + $0x60] sm:$0xff] %vm284, %v280
    %298 = vst.msk [vmem:[%s2 + $0x68] sm:$0xff] %vm284, %v281
    %299 = vst.msk [vmem:[%s2 + $0x70] sm:$0xff] %vm284, %v282
    %300 = vst.msk [vmem:[%s2 + $0x78] sm:$0xff] %vm284, %v283
    // Predicated region
    $region18: #{tpu_custom_call.1} parent=1 // pred_check
      _
    $region19: #{tpu_custom_call.1} parent=1 // pred_check_branch
      %302 = sbr.rel (0) target = $region21
    $region20: #{tpu_custom_call.1} parent=1 // pred_region
      _
    $region21: #{tpu_custom_call.1} parent=1 // pred_fallthru
      _
    // Predicated region
    $region22: #{tpu_custom_call.1} parent=1 // pred_check
      _
    $region23: #{tpu_custom_call.1} parent=1 // pred_check_branch
      %304 = sbr.rel (0) target = $region25
    $region24: #{tpu_custom_call.1} parent=1 // pred_region
      _
    $region25: #{tpu_custom_call.1} parent=1 // pred_fallthru
      _
    %305 = vsyncpa [#allocation3], 1
    %306 = vsyncpa [#allocation5], 1

</llo_original>
